<compile_context>
chip_gen: v7x
topology: tpu7x:2x2x1
jax: 0.10.0
libtpu: 0.0.40
codegen_flags: <defaults>
</compile_context>

<pallas_src>
import jax
import jax.numpy as jnp
from jax.experimental import pallas as pl
from jax.experimental.pallas import tpu as pltpu


def _round_up(v, mult):
    return ((v + mult - 1) // mult) * mult


def _make_mlp_kernel(num_layers, compute_dtype):
    """Fused kernel body: refs = (x, w0, b0, ..., w{L-1}, b{L-1}, out)."""

    def kernel(*refs):
        x_ref = refs[0]
        out_ref = refs[-1]
        param_refs = refs[1:-1]

        h = x_ref[...]
        for i in range(num_layers):
            w = param_refs[2 * i][...]
            b = param_refs[2 * i + 1][...].astype(jnp.float32)
            acc = jnp.dot(h, w, preferred_element_type=jnp.float32) + b
            if i < num_layers - 1:              # F.relu on all but the last layer
                acc = jnp.maximum(acc, 0.0)     # VPU
                h = acc.astype(compute_dtype)   # narrow back for the next MXU pass
            else:
                h = acc
        out_ref[...] = h.astype(out_ref.dtype)

    return kernel


def _vmem_limit_bytes():
    """Generation-aware scoped-VMEM limit (~3/4 of physical capacity)."""
    try:
        cap = int(pltpu.get_tpu_info().vmem_capacity_bytes)
    except Exception:
        cap = 64 * 1024 * 1024          # conservative (v7x-sized) fallback
    return (cap * 3) // 4               # ~48 MiB on v7x, ~96 MiB on v5e/v6e


def _pick_row_tile(m, input_dim, output_dim, feat_dims, itemsize,
                   vmem_limit, weight_bytes):
    """Largest balanced row tile that fits the VMEM budget."""
    sublane = max(8, 32 // itemsize)    # 8 rows f32, 16 bf16, 32 int8/fp8
    max_feat = max(feat_dims)
    # Concurrently live per row: double-buffered x and out tiles, the f32
    # accumulator, the previous layer's activation and its narrowed copy.
    per_row = (2 * input_dim * itemsize
               + 2 * output_dim * itemsize
               + max_feat * 4
               + 2 * max_feat * itemsize)
    row_cap = 1024 if vmem_limit >= (72 << 20) else 512   # v5e/v6e vs v7x
    avail = vmem_limit - weight_bytes - (2 << 20)          # Mosaic scratch reserve
    if avail < per_row * sublane:
        # TODO(synk): weight-chunked variant (extra grid axis over the widest
        # layer's contraction dim with an f32 accumulator) for hidden sizes
        # whose weights alone overflow VMEM; use the smallest legal tile here.
        tm_max = sublane
    else:
        tm_max = min(row_cap, (avail // per_row) // sublane * sublane)
    tm_max = max(sublane, min(tm_max, _round_up(m, sublane)))

    # Balance the grid: an even number of near-equal tiles keeps both v7x
    # TensorCores busy (negligible cost on single-TC chips: ~0.35 us per step).
    g = pl.cdiv(m, tm_max)
    if m >= 2 * sublane:
        g = max(g, 2)
        if g % 2:
            g += 1
    tm = max(sublane, min(tm_max, _round_up(pl.cdiv(m, g), sublane)))
    return tm


def _call_pallas(x2d, weights, biases, *, single_buffer_weights):
    num_layers = len(weights)
    m, input_dim = x2d.shape
    output_dim = int(weights[-1].shape[1])
    itemsize = jnp.dtype(x2d.dtype).itemsize

    vmem_limit = _vmem_limit_bytes()
    param_bytes = sum(
        int(w.size) * w.dtype.itemsize + int(b.size) * b.dtype.itemsize
        for w, b in zip(weights, biases))
    wb_factor = 1 if single_buffer_weights else 2
    feat_dims = [input_dim] + [int(w.shape[1]) for w in weights]
    tm = _pick_row_tile(m, input_dim, output_dim, feat_dims, itemsize,
                        vmem_limit, wb_factor * param_bytes)
    grid = (pl.cdiv(m, tm),)

    # NOTE: if input_dim were large and far from a 128 multiple, a one-time
    # lane-padded copy of x would improve input DMA granule efficiency; not
    # needed at these sizes.
    in_specs = [pl.BlockSpec((tm, input_dim), lambda i: (i, 0))]
    args = [x2d]
    weight_kwargs = (
        dict(pipeline_mode=pl.Buffered(1)) if single_buffer_weights else {})
    for w, b in zip(weights, biases):
        # Constant index_map -> resident blocks, never re-DMAed across steps.
        in_specs.append(pl.BlockSpec(w.shape, lambda i: (0, 0), **weight_kwargs))
        in_specs.append(pl.BlockSpec(b.shape, lambda i: (0, 0), **weight_kwargs))
        args.append(w)
        args.append(b)

    flops = 2 * m * sum(int(w.shape[0]) * int(w.shape[1]) for w in weights)
    bytes_accessed = (int(x2d.size) * itemsize
                      + m * output_dim * itemsize
                      + param_bytes)

    kernel = _make_mlp_kernel(num_layers, x2d.dtype)
    return pl.pallas_call(
        kernel,
        out_shape=jax.ShapeDtypeStruct((m, output_dim), x2d.dtype),
        grid=grid,
        in_specs=in_specs,
        out_specs=pl.BlockSpec((tm, output_dim), lambda i: (i, 0)),
        compiler_params=pltpu.CompilerParams(
            dimension_semantics=("parallel",),
            vmem_limit_bytes=int(vmem_limit)),
        cost_estimate=pl.CostEstimate(
            flops=int(flops), transcendentals=0,
            bytes_accessed=int(bytes_accessed)),
    )(*args)


def mlp_forward(x, weights, biases):
    """Applies the MLP (Linear -> ReLU ... -> Linear) to x of shape (..., input_dim)."""
    input_dim = int(weights[0].shape[0])
    output_dim = int(weights[-1].shape[1])
    lead_shape = x.shape[:-1]
    m = 1
    for d in lead_shape:
        m *= int(d)
    x2d = x.reshape(m, input_dim)

    try:
        out = _call_pallas(x2d, weights, biases, single_buffer_weights=True)
    except Exception:
        # Fallback for jax versions without single-buffer pipeline_mode support.
        out = _call_pallas(x2d, weights, biases, single_buffer_weights=False)
    return out.reshape(*lead_shape, output_dim)


def init_mlp_params(key, input_dim, hidden_dim, output_dim, num_layers,
                    dtype=jnp.float32):
    """Deterministic parameter init (shapes match nn.Linear of the module)."""
    h = [hidden_dim] * (num_layers - 1)
    dims_in = [input_dim] + h
    dims_out = h + [output_dim]
    weights, biases = [], []
    for n, k in zip(dims_in, dims_out):
        key, wk, bk = jax.random.split(key, 3)
        bound = 1.0 / (n ** 0.5)  # nn.Linear default U(-1/sqrt(in), 1/sqrt(in))
        w = jax.random.uniform(wk, (n, k), dtype, minval=-bound, maxval=bound)
        b = jax.random.uniform(bk, (1, k), dtype, minval=-bound, maxval=bound)
        weights.append(w)
        biases.append(b)
    return weights, biases


def mlp_reference(x, weights, biases):
    """Plain-JAX reference mirroring the PyTorch forward."""
    num_layers = len(weights)
    h = x
    for i, (w, b) in enumerate(zip(weights, biases)):
        h = h @ w + b[0]
        if i < num_layers - 1:
            h = jax.nn.relu(h)
    return h


if __name__ == "__main__":
    key = jax.random.PRNGKey(0)

    # Small shapes consistent with the module: MLP(32, 32, 16, num_layers=3)
    input_dim, hidden_dim, output_dim, num_layers = 32, 32, 16, 3
    batch, seq = 2, 8

    key, pkey, xkey = jax.random.split(key, 3)
    weights, biases = init_mlp_params(
        pkey, input_dim, hidden_dim, output_dim, num_layers)
    x = jax.random.normal(xkey, (batch, seq, input_dim), jnp.float32)

    out = mlp_forward(x, weights, biases)
    out = jax.block_until_ready(out)

    ref = mlp_reference(x, weights, biases)
    assert out.shape == (batch, seq, output_dim)
    assert jnp.allclose(out, ref, atol=1e-5, rtol=1e-5)

    print("KERNEL_OK")
</pallas_src>

<mosaic_0001>
module attributes {stable_mosaic.version = 11 : i64} {
  func.func @kernel(%arg0: i32, %arg1: memref<8x32xf32, #tpu.memory_space<vmem>>, %arg2: memref<32x32xf32, #tpu.memory_space<vmem>>, %arg3: memref<1x32xf32, #tpu.memory_space<vmem>>, %arg4: memref<32x32xf32, #tpu.memory_space<vmem>>, %arg5: memref<1x32xf32, #tpu.memory_space<vmem>>, %arg6: memref<32x16xf32, #tpu.memory_space<vmem>>, %arg7: memref<1x16xf32, #tpu.memory_space<vmem>>, %arg8: memref<8x16xf32, #tpu.memory_space<vmem>>) attributes {dimension_semantics = [#tpu.dimension_semantics<parallel>], iteration_bounds = array<i64: 2>, scalar_prefetch = 0 : i64, scratch_operands = 0 : i64, tpu.core_type = #tpu.core_type<tc>, window_params = [{transform_indices = @transform_0, window_bounds = array<i64: 8, 32>}, {pipeline_mode = #tpu.pipeline_mode<synchronous>, transform_indices = @transform_1, window_bounds = array<i64: 32, 32>}, {pipeline_mode = #tpu.pipeline_mode<synchronous>, transform_indices = @transform_2, window_bounds = array<i64: 1, 32>}, {pipeline_mode = #tpu.pipeline_mode<synchronous>, transform_indices = @transform_3, window_bounds = array<i64: 32, 32>}, {pipeline_mode = #tpu.pipeline_mode<synchronous>, transform_indices = @transform_4, window_bounds = array<i64: 1, 32>}, {pipeline_mode = #tpu.pipeline_mode<synchronous>, transform_indices = @transform_5, window_bounds = array<i64: 32, 16>}, {pipeline_mode = #tpu.pipeline_mode<synchronous>, transform_indices = @transform_6, window_bounds = array<i64: 1, 16>}, {transform_indices = @transform_7, window_bounds = array<i64: 8, 16>}]} {
    %c0 = arith.constant 0 : index
    %c0_0 = arith.constant 0 : index
    %0 = vector.load %arg1[%c0, %c0_0] : memref<8x32xf32, #tpu.memory_space<vmem>>, vector<8x32xf32>
    %c0_1 = arith.constant 0 : index
    %c0_2 = arith.constant 0 : index
    %1 = vector.load %arg2[%c0_1, %c0_2] : memref<32x32xf32, #tpu.memory_space<vmem>>, vector<32x32xf32>
    %c0_3 = arith.constant 0 : index
    %c0_4 = arith.constant 0 : index
    %2 = vector.load %arg3[%c0_3, %c0_4] : memref<1x32xf32, #tpu.memory_space<vmem>>, vector<1x32xf32>
    %cst = arith.constant dense<0.000000e+00> : vector<8x32xf32>
    %3 = tpu.matmul %0, %1, %cst {dimension_numbers = #tpu.dot_dimension_numbers<[1], [0], [0], [1], [0, 0, 1, 1], [], []>} : vector<8x32xf32>, vector<32x32xf32>, vector<8x32xf32> -> vector<8x32xf32>
    %4 = vector.broadcast %2 : vector<1x32xf32> to vector<8x32xf32>
    %5 = arith.addf %3, %4 : vector<8x32xf32>
    %cst_5 = arith.constant 0.000000e+00 : f32
    %6 = vector.broadcast %cst_5 : f32 to vector<8x32xf32>
    %7 = arith.maximumf %5, %6 : vector<8x32xf32>
    %c0_6 = arith.constant 0 : index
    %c0_7 = arith.constant 0 : index
    %8 = vector.load %arg4[%c0_6, %c0_7] : memref<32x32xf32, #tpu.memory_space<vmem>>, vector<32x32xf32>
    %c0_8 = arith.constant 0 : index
    %c0_9 = arith.constant 0 : index
    %9 = vector.load %arg5[%c0_8, %c0_9] : memref<1x32xf32, #tpu.memory_space<vmem>>, vector<1x32xf32>
    %cst_10 = arith.constant dense<0.000000e+00> : vector<8x32xf32>
    %10 = tpu.matmul %7, %8, %cst_10 {dimension_numbers = #tpu.dot_dimension_numbers<[1], [0], [0], [1], [0, 0, 1, 1], [], []>} : vector<8x32xf32>, vector<32x32xf32>, vector<8x32xf32> -> vector<8x32xf32>
    %11 = vector.broadcast %9 : vector<1x32xf32> to vector<8x32xf32>
    %12 = arith.addf %10, %11 : vector<8x32xf32>
    %cst_11 = arith.constant 0.000000e+00 : f32
    %13 = vector.broadcast %cst_11 : f32 to vector<8x32xf32>
    %14 = arith.maximumf %12, %13 : vector<8x32xf32>
    %c0_12 = arith.constant 0 : index
    %c0_13 = arith.constant 0 : index
    %15 = vector.load %arg6[%c0_12, %c0_13] : memref<32x16xf32, #tpu.memory_space<vmem>>, vector<32x16xf32>
    %c0_14 = arith.constant 0 : index
    %c0_15 = arith.constant 0 : index
    %16 = vector.load %arg7[%c0_14, %c0_15] : memref<1x16xf32, #tpu.memory_space<vmem>>, vector<1x16xf32>
    %cst_16 = arith.constant dense<0.000000e+00> : vector<8x16xf32>
    %17 = tpu.matmul %14, %15, %cst_16 {dimension_numbers = #tpu.dot_dimension_numbers<[1], [0], [0], [1], [0, 0, 1, 1], [], []>} : vector<8x32xf32>, vector<32x16xf32>, vector<8x16xf32> -> vector<8x16xf32>
    %18 = vector.broadcast %16 : vector<1x16xf32> to vector<8x16xf32>
    %19 = arith.addf %17, %18 : vector<8x16xf32>
    %c0_17 = arith.constant 0 : index
    %c0_18 = arith.constant 0 : index
    %20 = vector.load %arg8[%c0_17, %c0_18] : memref<8x16xf32, #tpu.memory_space<vmem>>, vector<8x16xf32>
    tpu.vector_store %arg8[%c0_17, %c0_18], %19 {strides = array<i32>} : memref<8x16xf32, #tpu.memory_space<vmem>>, vector<8x16xf32>,
    return
  }
  func.func @transform_0(%arg0: i32) -> (i32, i32) {
    %c0_i32 = arith.constant 0 : i32
    %c0_i32_0 = arith.constant 0 : i32
    return %arg0, %c0_i32 : i32, i32
  }
  func.func @transform_1(%arg0: i32) -> (i32, i32) {
    %c0_i32 = arith.constant 0 : i32
    %c0_i32_0 = arith.constant 0 : i32
    %c0_i32_1 = arith.constant 0 : i32
    return %c0_i32, %c0_i32_0 : i32, i32
  }
  func.func @transform_2(%arg0: i32) -> (i32, i32) {
    %c0_i32 = arith.constant 0 : i32
    %c0_i32_0 = arith.constant 0 : i32
    %c0_i32_1 = arith.constant 0 : i32
    return %c0_i32, %c0_i32_0 : i32, i32
  }
  func.func @transform_3(%arg0: i32) -> (i32, i32) {
    %c0_i32 = arith.constant 0 : i32
    %c0_i32_0 = arith.constant 0 : i32
    %c0_i32_1 = arith.constant 0 : i32
    return %c0_i32, %c0_i32_0 : i32, i32
  }
  func.func @transform_4(%arg0: i32) -> (i32, i32) {
    %c0_i32 = arith.constant 0 : i32
    %c0_i32_0 = arith.constant 0 : i32
    %c0_i32_1 = arith.constant 0 : i32
    return %c0_i32, %c0_i32_0 : i32, i32
  }
  func.func @transform_5(%arg0: i32) -> (i32, i32) {
    %c0_i32 = arith.constant 0 : i32
    %c0_i32_0 = arith.constant 0 : i32
    %c0_i32_1 = arith.constant 0 : i32
    return %c0_i32, %c0_i32_0 : i32, i32
  }
  func.func @transform_6(%arg0: i32) -> (i32, i32) {
    %c0_i32 = arith.constant 0 : i32
    %c0_i32_0 = arith.constant 0 : i32
    %c0_i32_1 = arith.constant 0 : i32
    return %c0_i32, %c0_i32_0 : i32, i32
  }
  func.func @transform_7(%arg0: i32) -> (i32, i32) {
    %c0_i32 = arith.constant 0 : i32
    %c0_i32_0 = arith.constant 0 : i32
    return %arg0, %c0_i32 : i32, i32
  }
}

module attributes {stable_mosaic.version = 11 : i64} {
  func.func @kernel(%arg0: i32, %arg1: memref<8x32xf32, #tpu.memory_space<vmem>>, %arg2: memref<32x32xf32, #tpu.memory_space<vmem>>, %arg3: memref<1x32xf32, #tpu.memory_space<vmem>>, %arg4: memref<32x32xf32, #tpu.memory_space<vmem>>, %arg5: memref<1x32xf32, #tpu.memory_space<vmem>>, %arg6: memref<32x16xf32, #tpu.memory_space<vmem>>, %arg7: memref<1x16xf32, #tpu.memory_space<vmem>>, %arg8: memref<8x16xf32, #tpu.memory_space<vmem>>) attributes {dimension_semantics = [#tpu.dimension_semantics<parallel>], iteration_bounds = array<i64: 2>, scalar_prefetch = 0 : i64, scratch_operands = 0 : i64, tpu.core_type = #tpu.core_type<tc>, window_params = [{transform_indices = @transform_0, window_bounds = array<i64: 8, 32>}, {pipeline_mode = #tpu.pipeline_mode<synchronous>, transform_indices = @transform_1, window_bounds = array<i64: 32, 32>}, {pipeline_mode = #tpu.pipeline_mode<synchronous>, transform_indices = @transform_2, window_bounds = array<i64: 1, 32>}, {pipeline_mode = #tpu.pipeline_mode<synchronous>, transform_indices = @transform_3, window_bounds = array<i64: 32, 32>}, {pipeline_mode = #tpu.pipeline_mode<synchronous>, transform_indices = @transform_4, window_bounds = array<i64: 1, 32>}, {pipeline_mode = #tpu.pipeline_mode<synchronous>, transform_indices = @transform_5, window_bounds = array<i64: 32, 16>}, {pipeline_mode = #tpu.pipeline_mode<synchronous>, transform_indices = @transform_6, window_bounds = array<i64: 1, 16>}, {transform_indices = @transform_7, window_bounds = array<i64: 8, 16>}]} {
    %c0 = arith.constant 0 : index
    %c0_0 = arith.constant 0 : index
    %0 = vector.load %arg1[%c0, %c0_0] : memref<8x32xf32, #tpu.memory_space<vmem>>, vector<8x32xf32>
    %c0_1 = arith.constant 0 : index
    %c0_2 = arith.constant 0 : index
    %1 = vector.load %arg2[%c0_1, %c0_2] : memref<32x32xf32, #tpu.memory_space<vmem>>, vector<32x32xf32>
    %c0_3 = arith.constant 0 : index
    %c0_4 = arith.constant 0 : index
    %2 = vector.load %arg3[%c0_3, %c0_4] : memref<1x32xf32, #tpu.memory_space<vmem>>, vector<1x32xf32>
    %cst = arith.constant dense<0.000000e+00> : vector<8x32xf32>
    %3 = tpu.matmul %0, %1, %cst {dimension_numbers = #tpu.dot_dimension_numbers<[1], [0], [0], [1], [0, 0, 1, 1], [], []>} : vector<8x32xf32>, vector<32x32xf32>, vector<8x32xf32> -> vector<8x32xf32>
    %4 = vector.broadcast %2 : vector<1x32xf32> to vector<8x32xf32>
    %5 = arith.addf %3, %4 : vector<8x32xf32>
    %cst_5 = arith.constant 0.000000e+00 : f32
    %6 = vector.broadcast %cst_5 : f32 to vector<8x32xf32>
    %7 = arith.maximumf %5, %6 : vector<8x32xf32>
    %c0_6 = arith.constant 0 : index
    %c0_7 = arith.constant 0 : index
    %8 = vector.load %arg4[%c0_6, %c0_7] : memref<32x32xf32, #tpu.memory_space<vmem>>, vector<32x32xf32>
    %c0_8 = arith.constant 0 : index
    %c0_9 = arith.constant 0 : index
    %9 = vector.load %arg5[%c0_8, %c0_9] : memref<1x32xf32, #tpu.memory_space<vmem>>, vector<1x32xf32>
    %cst_10 = arith.constant dense<0.000000e+00> : vector<8x32xf32>
    %10 = tpu.matmul %7, %8, %cst_10 {dimension_numbers = #tpu.dot_dimension_numbers<[1], [0], [0], [1], [0, 0, 1, 1], [], []>} : vector<8x32xf32>, vector<32x32xf32>, vector<8x32xf32> -> vector<8x32xf32>
    %11 = vector.broadcast %9 : vector<1x32xf32> to vector<8x32xf32>
    %12 = arith.addf %10, %11 : vector<8x32xf32>
    %cst_11 = arith.constant 0.000000e+00 : f32
    %13 = vector.broadcast %cst_11 : f32 to vector<8x32xf32>
    %14 = arith.maximumf %12, %13 : vector<8x32xf32>
    %c0_12 = arith.constant 0 : index
    %c0_13 = arith.constant 0 : index
    %15 = vector.load %arg6[%c0_12, %c0_13] : memref<32x16xf32, #tpu.memory_space<vmem>>, vector<32x16xf32>
    %c0_14 = arith.constant 0 : index
    %c0_15 = arith.constant 0 : index
    %16 = vector.load %arg7[%c0_14, %c0_15] : memref<1x16xf32, #tpu.memory_space<vmem>>, vector<1x16xf32>
    %cst_16 = arith.constant dense<0.000000e+00> : vector<8x16xf32>
    %17 = tpu.matmul %14, %15, %cst_16 {dimension_numbers = #tpu.dot_dimension_numbers<[1], [0], [0], [1], [0, 0, 1, 1], [], []>} : vector<8x32xf32>, vector<32x16xf32>, vector<8x16xf32> -> vector<8x16xf32>
    %18 = vector.broadcast %16 : vector<1x16xf32> to vector<8x16xf32>
    %19 = arith.addf %17, %18 : vector<8x16xf32>
    %c0_17 = arith.constant 0 : index
    %c0_18 = arith.constant 0 : index
    %20 = vector.load %arg8[%c0_17, %c0_18] : memref<8x16xf32, #tpu.memory_space<vmem>>, vector<8x16xf32>
    tpu.vector_store %arg8[%c0_17, %c0_18], %19 {strides = array<i32>} : memref<8x16xf32, #tpu.memory_space<vmem>>, vector<8x16xf32>,
    return
  }
  func.func @transform_0(%arg0: i32) -> (i32, i32) {
    %c0_i32 = arith.constant 0 : i32
    %c0_i32_0 = arith.constant 0 : i32
    return %arg0, %c0_i32 : i32, i32
  }
  func.func @transform_1(%arg0: i32) -> (i32, i32) {
    %c0_i32 = arith.constant 0 : i32
    %c0_i32_0 = arith.constant 0 : i32
    %c0_i32_1 = arith.constant 0 : i32
    return %c0_i32, %c0_i32_0 : i32, i32
  }
  func.func @transform_2(%arg0: i32) -> (i32, i32) {
    %c0_i32 = arith.constant 0 : i32
    %c0_i32_0 = arith.constant 0 : i32
    %c0_i32_1 = arith.constant 0 : i32
    return %c0_i32, %c0_i32_0 : i32, i32
  }
  func.func @transform_3(%arg0: i32) -> (i32, i32) {
    %c0_i32 = arith.constant 0 : i32
    %c0_i32_0 = arith.constant 0 : i32
    %c0_i32_1 = arith.constant 0 : i32
    return %c0_i32, %c0_i32_0 : i32, i32
  }
  func.func @transform_4(%arg0: i32) -> (i32, i32) {
    %c0_i32 = arith.constant 0 : i32
    %c0_i32_0 = arith.constant 0 : i32
    %c0_i32_1 = arith.constant 0 : i32
    return %c0_i32, %c0_i32_0 : i32, i32
  }
  func.func @transform_5(%arg0: i32) -> (i32, i32) {
    %c0_i32 = arith.constant 0 : i32
    %c0_i32_0 = arith.constant 0 : i32
    %c0_i32_1 = arith.constant 0 : i32
    return %c0_i32, %c0_i32_0 : i32, i32
  }
  func.func @transform_6(%arg0: i32) -> (i32, i32) {
    %c0_i32 = arith.constant 0 : i32
    %c0_i32_0 = arith.constant 0 : i32
    %c0_i32_1 = arith.constant 0 : i32
    return %c0_i32, %c0_i32_0 : i32, i32
  }
  func.func @transform_7(%arg0: i32) -> (i32, i32) {
    %c0_i32 = arith.constant 0 : i32
    %c0_i32_0 = arith.constant 0 : i32
    return %arg0, %c0_i32 : i32, i32
  }
}

</mosaic_0001>

<llo_original>
// kernel: tpu_custom_call.1
$region0: #{tpu_custom_call.1}
  #allocation0 [shape = 'u32[]', space=smem, size = 0x4, offset = 0x4, fixed_abs, tag = 'smem constant byte address 0x4 - core index']
  #allocation1 [shape = 'u32[144,128]{1,0:T(1,128)}', space=vmem, size = 0x12000, scoped, tag = 'internal scratch']
  %s0 = inlined_call_operand.vmem [shape: f32[16,32], index: 0, kind: input, shape index: {}]
  %s1 = inlined_call_operand.vmem [shape: f32[32,32], index: 1, kind: input, shape index: {}]
  %s2 = inlined_call_operand.vmem [shape: f32[1,32], index: 2, kind: input, shape index: {}]
  %s3 = inlined_call_operand.hbm [shape: f32[32,32], index: 3, kind: input, shape index: {}]
  %s4 = inlined_call_operand.vmem [shape: f32[1,32], index: 4, kind: input, shape index: {}]
  %s5 = inlined_call_operand.vmem [shape: f32[32,16], index: 5, kind: input, shape index: {}]
  %s6 = inlined_call_operand.vmem [shape: f32[1,16], index: 6, kind: input, shape index: {}]
  %s7 = inlined_call_operand.hbm [shape: f32[16,16], index: 7, kind: output, shape index: {}]
  %s8 = sld [smem:[#allocation0]]
  $region65: #{tpu_custom_call.1} parent=0
    _
  %s10 = ssub.s32 1, %s8
  %s11 = scalar_select 0, %s10, %s8
  $region1: #{tpu_custom_call.1} parent=0
    #allocation2 [shape = 'u8[16384]{0}', space=vmem, size = 0x4000, scoped, tag = 'input window, operand 3, single buffered']
    #allocation3 [shape = 's32[2]{0}', space=sflag, size = 0x8, scoped, tag = 'scoped memory for tpu_custom_call.1']
    #allocation4 [shape = 's32[2]{0}', space=sflag, size = 0x8, scoped, tag = 'scoped memory for tpu_custom_call.1']
    #allocation5 [shape = 'u8[8192]{0}', space=vmem, size = 0x2000, scoped, tag = 'output window, operand 0']
    %12 = vsyncpa [#allocation3], 0
    %13 = vsyncpa [#allocation4], 0
    %s14 = scalar_lea.sflag [#allocation4], 1
    %15 = vsyncpa %s14, 0
    loop: start=0, step=1, limit=4
    $region2: #{tpu_custom_call.1} parent=1 // loop_pre_header
      _
    $region3: #{tpu_custom_call.1} parent=1 // loop_header
      %s17 = sphi 0, %s21
      %p18 = scmp.ge.s32.totalorder %s17, 4
      %s27 = sphi 0, %s29
      %s30 = sphi 0, %s27
      %s31 = sphi 0, %s30
      %s47 = sphi 0, %s31
      %s51 = sphi 0, %s51
      %s53 = sphi 0, %s51
      %s54 = sphi 0, %s53
      %s68 = sphi 0, %s54
      %s72 = sphi 0, %s72
      %s74 = sphi 0, %s72
      %s75 = sphi 0, %s74
      %s89 = sphi 0, %s75
      %s93 = sphi 0, %s93
      %s95 = sphi 0, %s93
      %s96 = sphi 0, %s95
      %s110 = sphi 0, %s96
      %s114 = sphi 0, %s114
      %s116 = sphi 0, %s114
      %s117 = sphi 0, %s116
      %s131 = sphi 0, %s117
      %s135 = sphi 0, %s135
      %s137 = sphi 0, %s135
      %s138 = sphi 0, %s137
      %s152 = sphi 0, %s138
      %s156 = sphi 0, %s156
      %s158 = sphi 0, %s156
      %s159 = sphi 0, %s158
      %s173 = sphi 0, %s159
      %s179 = sphi 0, %s181
      %s182 = sphi 0, %s179
      %s183 = sphi 0, %s182
      %s199 = sphi 0, %s183
    $region4: #{tpu_custom_call.1} parent=1 // loop_header_branch
      %20 = sbr.rel (%p18) target = $region8
    $region5: #{tpu_custom_call.1} parent=1 // loop_body
      %s22 = ssub.s32 %s17, 1
      %s23 = ssub.s32 %s17, 2
      %s24 = sadd.s32 %s17, 1
      %s25 = ssub.s32 %s17, %s24
      %p26 = scmp.eq.s32.totalorder %s25, 0
      %s28 = sadd.s32 %s27, 1
      %s29 = scalar_select %p26, %s27, %s28
      %p32 = pneg %p26
      %p33 = scmp.eq.s32.totalorder %s17, 1
      %p34 = por %p32, %p33
      %p35 = scmp.ne.s32.totalorder %s27, %s30
      %p36 = scmp.eq.s32.totalorder %s17, 0
      %p37 = por %p35, %p36
      %p38 = scmp.ne.s32.totalorder %s27, %s30
      %p39 = scmp.eq.s32.totalorder %s22, 1
      %p40 = por %p38, %p39
      %p41 = scmp.ne.s32.totalorder %s30, %s31
      %p42 = scmp.eq.s32.totalorder %s22, 0
      %p43 = por %p41, %p42
      %p44 = scmp.ne.s32.totalorder %s30, %s31
      %p45 = scmp.eq.s32.totalorder %s23, 1
      %p46 = por %p44, %p45
      %p48 = scmp.ne.s32.totalorder %s31, %s47
      %p49 = scmp.eq.s32.totalorder %s23, 0
      %p50 = por %p48, %p49
      %s52 = sadd.s32 %s51, 1
      %p55 = scmp.eq.s32.totalorder %s17, 1
      %p56 = scmp.ne.s32.totalorder %s51, %s53
      %p57 = scmp.eq.s32.totalorder %s17, 0
      %p58 = por %p56, %p57
      %p59 = scmp.ne.s32.totalorder %s51, %s53
      %p60 = scmp.eq.s32.totalorder %s22, 1
      %p61 = por %p59, %p60
      %p62 = scmp.ne.s32.totalorder %s53, %s54
      %p63 = scmp.eq.s32.totalorder %s22, 0
      %p64 = por %p62, %p63
      %p65 = scmp.ne.s32.totalorder %s53, %s54
      %p66 = scmp.eq.s32.totalorder %s23, 1
      %p67 = por %p65, %p66
      %p69 = scmp.ne.s32.totalorder %s54, %s68
      %p70 = scmp.eq.s32.totalorder %s23, 0
      %p71 = por %p69, %p70
      %s73 = sadd.s32 %s72, 1
      %p76 = scmp.eq.s32.totalorder %s17, 1
      %p77 = scmp.ne.s32.totalorder %s72, %s74
      %p78 = scmp.eq.s32.totalorder %s17, 0
      %p79 = por %p77, %p78
      %p80 = scmp.ne.s32.totalorder %s72, %s74
      %p81 = scmp.eq.s32.totalorder %s22, 1
      %p82 = por %p80, %p81
      %p83 = scmp.ne.s32.totalorder %s74, %s75
      %p84 = scmp.eq.s32.totalorder %s22, 0
      %p85 = por %p83, %p84
      %p86 = scmp.ne.s32.totalorder %s74, %s75
      %p87 = scmp.eq.s32.totalorder %s23, 1
      %p88 = por %p86, %p87
      %p90 = scmp.ne.s32.totalorder %s75, %s89
      %p91 = scmp.eq.s32.totalorder %s23, 0
      %p92 = por %p90, %p91
      %s94 = sadd.s32 %s93, 1
      %p97 = scmp.eq.s32.totalorder %s17, 1
      %p98 = scmp.ne.s32.totalorder %s93, %s95
      %p99 = scmp.eq.s32.totalorder %s17, 0
      %p100 = por %p98, %p99
      %p101 = scmp.ne.s32.totalorder %s93, %s95
      %p102 = scmp.eq.s32.totalorder %s22, 1
      %p103 = por %p101, %p102
      %p104 = scmp.ne.s32.totalorder %s95, %s96
      %p105 = scmp.eq.s32.totalorder %s22, 0
      %p106 = por %p104, %p105
      %p107 = scmp.ne.s32.totalorder %s95, %s96
      %p108 = scmp.eq.s32.totalorder %s23, 1
      %p109 = por %p107, %p108
      %p111 = scmp.ne.s32.totalorder %s96, %s110
      %p112 = scmp.eq.s32.totalorder %s23, 0
      %p113 = por %p111, %p112
      %s115 = sadd.s32 %s114, 1
      %p118 = scmp.eq.s32.totalorder %s17, 1
      %p119 = scmp.ne.s32.totalorder %s114, %s116
      %p120 = scmp.eq.s32.totalorder %s17, 0
      %p121 = por %p119, %p120
      %p122 = scmp.ne.s32.totalorder %s114, %s116
      %p123 = scmp.eq.s32.totalorder %s22, 1
      %p124 = por %p122, %p123
      %p125 = scmp.ne.s32.totalorder %s116, %s117
      %p126 = scmp.eq.s32.totalorder %s22, 0
      %p127 = por %p125, %p126
      %p128 = scmp.ne.s32.totalorder %s116, %s117
      %p129 = scmp.eq.s32.totalorder %s23, 1
      %p130 = por %p128, %p129
      %p132 = scmp.ne.s32.totalorder %s117, %s131
      %p133 = scmp.eq.s32.totalorder %s23, 0
      %p134 = por %p132, %p133
      %s136 = sadd.s32 %s135, 1
      %p139 = scmp.eq.s32.totalorder %s17, 1
      %p140 = scmp.ne.s32.totalorder %s135, %s137
      %p141 = scmp.eq.s32.totalorder %s17, 0
      %p142 = por %p140, %p141
      %p143 = scmp.ne.s32.totalorder %s135, %s137
      %p144 = scmp.eq.s32.totalorder %s22, 1
      %p145 = por %p143, %p144
      %p146 = scmp.ne.s32.totalorder %s137, %s138
      %p147 = scmp.eq.s32.totalorder %s22, 0
      %p148 = por %p146, %p147
      %p149 = scmp.ne.s32.totalorder %s137, %s138
      %p150 = scmp.eq.s32.totalorder %s23, 1
      %p151 = por %p149, %p150
      %p153 = scmp.ne.s32.totalorder %s138, %s152
      %p154 = scmp.eq.s32.totalorder %s23, 0
      %p155 = por %p153, %p154
      %s157 = sadd.s32 %s156, 1
      %p160 = scmp.eq.s32.totalorder %s17, 1
      %p161 = scmp.ne.s32.totalorder %s156, %s158
      %p162 = scmp.eq.s32.totalorder %s17, 0
      %p163 = por %p161, %p162
      %p164 = scmp.ne.s32.totalorder %s156, %s158
      %p165 = scmp.eq.s32.totalorder %s22, 1
      %p166 = por %p164, %p165
      %p167 = scmp.ne.s32.totalorder %s158, %s159
      %p168 = scmp.eq.s32.totalorder %s22, 0
      %p169 = por %p167, %p168
      %p170 = scmp.ne.s32.totalorder %s158, %s159
      %p171 = scmp.eq.s32.totalorder %s23, 1
      %p172 = por %p170, %p171
      %p174 = scmp.ne.s32.totalorder %s159, %s173
      %p175 = scmp.eq.s32.totalorder %s23, 0
      %p176 = por %p174, %p175
      %s177 = ssub.s32 %s17, %s24
      %p178 = scmp.eq.s32.totalorder %s177, 0
      %s180 = sadd.s32 %s179, 1
      %s181 = scalar_select %p178, %s179, %s180
      %p184 = pneg %p178
      %p185 = scmp.eq.s32.totalorder %s17, 1
      %p186 = por %p184, %p185
      %p187 = scmp.ne.s32.totalorder %s179, %s182
      %p188 = scmp.eq.s32.totalorder %s17, 0
      %p189 = por %p187, %p188
      %p190 = scmp.ne.s32.totalorder %s179, %s182
      %p191 = scmp.eq.s32.totalorder %s22, 1
      %p192 = por %p190, %p191
      %p193 = scmp.ne.s32.totalorder %s182, %s183
      %p194 = scmp.eq.s32.totalorder %s22, 0
      %p195 = por %p193, %p194
      %p196 = scmp.ne.s32.totalorder %s182, %s183
      %p197 = scmp.eq.s32.totalorder %s23, 1
      %p198 = por %p196, %p197
      %p200 = scmp.ne.s32.totalorder %s183, %s199
      %p201 = scmp.eq.s32.totalorder %s23, 0
      %p202 = por %p200, %p201
      %p203 = scmp.le.s32.totalorder 1, %s17
      %p204 = scmp.lt.s32.totalorder %s17, 3
      %p205 = pnand %p203, %p204
      %p206 = pneg %p205
      // Predicated region
      $region9: #{tpu_custom_call.1} parent=5 // pred_check
        _
      $region10: #{tpu_custom_call.1} parent=5 // pred_check_branch
        %208 = sbr.rel (%p205) target = $region12
      $region11: #{tpu_custom_call.1} parent=5 // pred_region
        %s209 = ssub.s32 %s17, 1
        // Predicated region
        $region13: #{tpu_custom_call.1} parent=11 // pred_check
          %p210 = pneg %p64
        $region14: #{tpu_custom_call.1} parent=11 // pred_check_branch
          %212 = sbr.rel (%p210) target = $region16
        $region15: #{tpu_custom_call.1} parent=11 // pred_region
          _
        $region16: #{tpu_custom_call.1} parent=11 // pred_fallthru
          _
        // Predicated region
        $region17: #{tpu_custom_call.1} parent=11 // pred_check
          %p213 = pneg %p85
        $region18: #{tpu_custom_call.1} parent=11 // pred_check_branch
          %215 = sbr.rel (%p213) target = $region20
        $region19: #{tpu_custom_call.1} parent=11 // pred_region
          _
        $region20: #{tpu_custom_call.1} parent=11 // pred_fallthru
          _
        // Predicated region
        $region21: #{tpu_custom_call.1} parent=11 // pred_check
          %p216 = pneg %p106
        $region22: #{tpu_custom_call.1} parent=11 // pred_check_branch
          %218 = sbr.rel (%p216) target = $region24
        $region23: #{tpu_custom_call.1} parent=11 // pred_region
          %s220 = ssub.s32 512, 512
          %221 = vsyncadd [#allocation3], %s220
          %s222 = sshll.u32 [#allocation2], 4
          %s223 = int_to_ptr.vmem [resolvable:$true] %s222
          %228 = dma.hbm_to_vmem [thread:$0]  %s3, 512, %s223, [#allocation3], 128, 128, 8
        $region24: #{tpu_custom_call.1} parent=11 // pred_fallthru
          _
        // Predicated region
        $region25: #{tpu_custom_call.1} parent=11 // pred_check
          %p229 = pneg %p127
        $region26: #{tpu_custom_call.1} parent=11 // pred_check_branch
          %231 = sbr.rel (%p229) target = $region28
        $region27: #{tpu_custom_call.1} parent=11 // pred_region
          _
        $region28: #{tpu_custom_call.1} parent=11 // pred_fallthru
          _
        // Predicated region
        $region29: #{tpu_custom_call.1} parent=11 // pred_check
          %p232 = pneg %p148
        $region30: #{tpu_custom_call.1} parent=11 // pred_check_branch
          %234 = sbr.rel (%p232) target = $region32
        $region31: #{tpu_custom_call.1} parent=11 // pred_region
          _
        $region32: #{tpu_custom_call.1} parent=11 // pred_fallthru
          _
        // Predicated region
        $region33: #{tpu_custom_call.1} parent=11 // pred_check
          %p235 = pneg %p169
        $region34: #{tpu_custom_call.1} parent=11 // pred_check_branch
          %237 = sbr.rel (%p235) target = $region36
        $region35: #{tpu_custom_call.1} parent=11 // pred_region
          _
        $region36: #{tpu_custom_call.1} parent=11 // pred_fallthru
          _
      $region12: #{tpu_custom_call.1} parent=5 // pred_fallthru
        _
      %p238 = scmp.lt.s32.totalorder %s17, 2
      // Predicated region
      $region37: #{tpu_custom_call.1} parent=5 // pred_check
        %p239 = pneg %p238
      $region38: #{tpu_custom_call.1} parent=5 // pred_check_branch
        %241 = sbr.rel (%p239) target = $region40
      $region39: #{tpu_custom_call.1} parent=5 // pred_region
        // Predicated region
        $region41: #{tpu_custom_call.1} parent=39 // pred_check
          %p242 = pneg %p37
        $region42: #{tpu_custom_call.1} parent=39 // pred_check_branch
          %244 = sbr.rel (%p242) target = $region44
        $region43: #{tpu_custom_call.1} parent=39 // pred_region
          %p245 = scmp.lt.s32.totalorder %s17, 1
          %s246 = scalar_select %p245, %s17, 1
          %s247 = smul.addr %s246, 8
          %s248 = scalar_lea.vmem %s0, %s247
        $region44: #{tpu_custom_call.1} parent=39 // pred_fallthru
          _
      $region40: #{tpu_custom_call.1} parent=5 // pred_fallthru
        _
      %p249 = scmp.le.s32.totalorder 1, %s17
      %p250 = scmp.lt.s32.totalorder %s17, 3
      %p251 = pnand %p249, %p250
      %p252 = pneg %p251
      // Predicated region
      $region45: #{tpu_custom_call.1} parent=5 // pred_check
        _
      $region46: #{tpu_custom_call.1} parent=5 // pred_check_branch
        %254 = sbr.rel (%p251) target = $region48
      $region47: #{tpu_custom_call.1} parent=5 // pred_region
        %s255 = ssub.s32 %s17, 1
        // Predicated region
        $region49: #{tpu_custom_call.1} parent=47 // pred_check
          %p256 = pneg %p106
        $region50: #{tpu_custom_call.1} parent=47 // pred_check_branch
          %258 = sbr.rel (%p256) target = $region52
        $region51: #{tpu_custom_call.1} parent=47 // pred_region
          %259 = dma.done [#allocation3], 512
        $region52: #{tpu_custom_call.1} parent=47 // pred_fallthru
          _
        %p260 = scmp.lt.s32.totalorder %s22, 1
        %s261 = scalar_select %p260, %s22, 1
        %s262 = smul.addr %s261, 8
        %s263 = scalar_lea.vmem %s0, %s262
        %p264 = pneg %p43
        %p265 = pneg %p40
        %p266 = pneg %p64
        %p267 = pneg %p61
        %p268 = pneg %p85
        %p269 = pneg %p82
        %p270 = pneg %p106
        %p271 = pneg %p103
        %p272 = pneg %p127
        %p273 = pneg %p124
        %p274 = pneg %p148
        %p275 = pneg %p145
        %p276 = pneg %p169
        %p277 = pneg %p166
        %p278 = pneg %p195
        %p279 = pneg %p192
        %s280 = sand.u32 %s182, 1
        %s281 = scalar_lea.sflag [#allocation4], %s280
        %s282 = sand.u32 %s182, 1
        %s283 = smul.addr %s282, 8
        %s284 = scalar_lea.vmem [#allocation5], %s283
        %p285 = scmp.lt.s32.totalorder %s22, 1
        %s286 = scalar_select %p285, %s22, 1
        %s287 = smul.addr %s286, 8
        %s288 = scalar_lea.vmem %s0, %s287
        %v289 = vld [vmem:[%s288] sm:$0xff]
        %v290 = vld [vmem:[%s1] sm:$0xff]
        %v291 = vld [vmem:[%s1 + $0x8] sm:$0xff]
        %v292 = vld [vmem:[%s1 + $0x10] sm:$0xff]
        %v293 = vld [vmem:[%s1 + $0x18] sm:$0xff]
        %v294 = vld [vmem:[%s2] sm:$0x1]
        %v296 = vlaneseq
        %v297 = vshrl.u32 %v296, 7
        %v298 = vsub.s32 0, %v297
        %v299 = vrot.slane %v294, %v298
        %vm301 = vcmask 261120
        %v303 = vsel %vm301, %v289, 0
        %305 = vmatprep.subr.mxu0 0.0
        %306 = vmatpush1.msra.mxu0 %v290
        %307 = vmatprep.subr.mxu0 0.0
        %308 = vmatpush1.msra.mxu0 %v291
        %309 = vmatprep.subr.mxu0 0.0
        %310 = vmatpush1.msra.mxu0 %v292
        %311 = vmatprep.subr.mxu0 0.0
        %312 = vmatpush1.msra.mxu0 %v293
        %313 = vmatprep.subr.mxu0 0.0
        %314 = vmatpush1.msra.mxu0 0.0
        %315 = vmatprep.subr.mxu0 0.0
        %316 = vmatpush1.msra.mxu0 0.0
        %317 = vmatprep.subr.mxu0 0.0
        %318 = vmatpush1.msra.mxu0 0.0
        %319 = vmatprep.subr.mxu0 0.0
        %320 = vmatpush1.msra.mxu0 0.0
        %321 = vmatprep.subr.mxu0 0.0
        %322 = vmatpush1.msra.mxu0 0.0
        %323 = vmatprep.subr.mxu0 0.0
        %324 = vmatpush1.msra.mxu0 0.0
        %325 = vmatprep.subr.mxu0 0.0
        %326 = vmatpush1.msra.mxu0 0.0
        %327 = vmatprep.subr.mxu0 0.0
        %328 = vmatpush1.msra.mxu0 0.0
        %329 = vmatprep.subr.mxu0 0.0
        %330 = vmatpush1.msra.mxu0 0.0
        %331 = vmatprep.subr.mxu0 0.0
        %332 = vmatpush1.msra.mxu0 0.0
        %333 = vmatprep.subr.mxu0 0.0
        %334 = vmatpush1.msra.mxu0 0.0
        %335 = vmatprep.subr.mxu0 0.0
        %336 = vmatpush1.msra.mxu0 0.0
        %337 = vmatprep.subr.mxu0 0.0
        %338 = vmatpush1.msra.mxu0 0.0
        %339 = vmatprep.subr.mxu0 0.0
        %340 = vmatpush1.msra.mxu0 0.0
        %341 = vmatprep.subr.mxu0 0.0
        %342 = vmatpush1.msra.mxu0 0.0
        %343 = vmatprep.subr.mxu0 0.0
        %344 = vmatpush1.msra.mxu0 0.0
        %345 = vmatprep.subr.mxu0 0.0
        %346 = vmatpush1.msra.mxu0 0.0
        %347 = vmatprep.subr.mxu0 0.0
        %348 = vmatpush1.msra.mxu0 0.0
        %349 = vmatprep.subr.mxu0 0.0
        %350 = vmatpush1.msra.mxu0 0.0
        %351 = vmatprep.subr.mxu0 0.0
        %352 = vmatpush1.msra.mxu0 0.0
        %353 = vmatprep.subr.mxu0 0.0
        %354 = vmatpush1.msra.mxu0 0.0
        %355 = vmatprep.subr.mxu0 0.0
        %356 = vmatpush1.msra.mxu0 0.0
        %357 = vmatprep.subr.mxu0 0.0
        %358 = vmatpush1.msra.mxu0 0.0
        %359 = vmatprep.subr.mxu0 0.0
        %360 = vmatpush1.msra.mxu0 0.0
        %361 = vmatprep.subr.mxu0 0.0
        %362 = vmatpush1.msra.mxu0 0.0
        %363 = vmatprep.subr.mxu0 0.0
        %364 = vmatpush1.msra.mxu0 0.0
        %365 = vmatprep.subr.mxu0 0.0
        %366 = vmatpush1.msra.mxu0 0.0
        %367 = vmatprep.subr.mxu0 0.0
        %368 = vmatpush1.msra.mxu0 0.0
        %369 = vmatprep.mubr.f32.mxu0 0.0
        %370 = vmatmul.mubr.f32.gmra.mrb[0].mxu0 %v303
        %v371 = vpop.f32.mrb[0].mxu0
        %v372 = vadd.f32 %v299, %v371
        %v373 = vpop.f32.mrb[0].mxu0
        %374 = vdwg.mxu0
        %v375 = vmax.f32 %v372, 0.0
        %v376 = vld [vmem:[#allocation2] sm:$0xff]
        %v377 = vld [vmem:[#allocation2 + $0x8] sm:$0xff]
        %v378 = vld [vmem:[#allocation2 + $0x10] sm:$0xff]
        %v379 = vld [vmem:[#allocation2 + $0x18] sm:$0xff]
        %v380 = vld [vmem:[%s4] sm:$0x1]
        %v382 = vlaneseq
        %v383 = vshrl.u32 %v382, 7
        %v384 = vsub.s32 0, %v383
        %v385 = vrot.slane %v380, %v384
        %v388 = vsel %vm301, %v375, 0
        %390 = vmatprep.subr.mxu0 0.0
        %391 = vmatpush1.msra.mxu0 %v376
        %392 = vmatprep.subr.mxu0 0.0
        %393 = vmatpush1.msra.mxu0 %v377
        %394 = vmatprep.subr.mxu0 0.0
        %395 = vmatpush1.msra.mxu0 %v378
        %396 = vmatprep.subr.mxu0 0.0
        %397 = vmatpush1.msra.mxu0 %v379
        %398 = vmatprep.subr.mxu0 0.0
        %399 = vmatpush1.msra.mxu0 0.0
        %400 = vmatprep.subr.mxu0 0.0
        %401 = vmatpush1.msra.mxu0 0.0
        %402 = vmatprep.subr.mxu0 0.0
        %403 = vmatpush1.msra.mxu0 0.0
        %404 = vmatprep.subr.mxu0 0.0
        %405 = vmatpush1.msra.mxu0 0.0
        %406 = vmatprep.subr.mxu0 0.0
        %407 = vmatpush1.msra.mxu0 0.0
        %408 = vmatprep.subr.mxu0 0.0
        %409 = vmatpush1.msra.mxu0 0.0
        %410 = vmatprep.subr.mxu0 0.0
        %411 = vmatpush1.msra.mxu0 0.0
        %412 = vmatprep.subr.mxu0 0.0
        %413 = vmatpush1.msra.mxu0 0.0
        %414 = vmatprep.subr.mxu0 0.0
        %415 = vmatpush1.msra.mxu0 0.0
        %416 = vmatprep.subr.mxu0 0.0
        %417 = vmatpush1.msra.mxu0 0.0
        %418 = vmatprep.subr.mxu0 0.0
        %419 = vmatpush1.msra.mxu0 0.0
        %420 = vmatprep.subr.mxu0 0.0
        %421 = vmatpush1.msra.mxu0 0.0
        %422 = vmatprep.subr.mxu0 0.0
        %423 = vmatpush1.msra.mxu0 0.0
        %424 = vmatprep.subr.mxu0 0.0
        %425 = vmatpush1.msra.mxu0 0.0
        %426 = vmatprep.subr.mxu0 0.0
        %427 = vmatpush1.msra.mxu0 0.0
        %428 = vmatprep.subr.mxu0 0.0
        %429 = vmatpush1.msra.mxu0 0.0
        %430 = vmatprep.subr.mxu0 0.0
        %431 = vmatpush1.msra.mxu0 0.0
        %432 = vmatprep.subr.mxu0 0.0
        %433 = vmatpush1.msra.mxu0 0.0
        %434 = vmatprep.subr.mxu0 0.0
        %435 = vmatpush1.msra.mxu0 0.0
        %436 = vmatprep.subr.mxu0 0.0
        %437 = vmatpush1.msra.mxu0 0.0
        %438 = vmatprep.subr.mxu0 0.0
        %439 = vmatpush1.msra.mxu0 0.0
        %440 = vmatprep.subr.mxu0 0.0
        %441 = vmatpush1.msra.mxu0 0.0
        %442 = vmatprep.subr.mxu0 0.0
        %443 = vmatpush1.msra.mxu0 0.0
        %444 = vmatprep.subr.mxu0 0.0
        %445 = vmatpush1.msra.mxu0 0.0
        %446 = vmatprep.subr.mxu0 0.0
        %447 = vmatpush1.msra.mxu0 0.0
        %448 = vmatprep.subr.mxu0 0.0
        %449 = vmatpush1.msra.mxu0 0.0
        %450 = vmatprep.subr.mxu0 0.0
        %451 = vmatpush1.msra.mxu0 0.0
        %452 = vmatprep.subr.mxu0 0.0
        %453 = vmatpush1.msra.mxu0 0.0
        %454 = vmatprep.mubr.f32.mxu0 0.0
        %455 = vmatmul.mubr.f32.gmra.mrb[0].mxu0 %v388
        %v456 = vpop.f32.mrb[0].mxu0
        %v457 = vadd.f32 %v385, %v456
        %v458 = vpop.f32.mrb[0].mxu0
        %459 = vdwg.mxu0
        %v460 = vmax.f32 %v457, 0.0
        %v461 = vld [vmem:[%s5] sm:$0xff]
        %v462 = vld [vmem:[%s5 + $0x8] sm:$0xff]
        %v463 = vld [vmem:[%s5 + $0x10] sm:$0xff]
        %v464 = vld [vmem:[%s5 + $0x18] sm:$0xff]
        %v465 = vld [vmem:[%s6] sm:$0x1]
        %v467 = vlaneseq
        %v468 = vshrl.u32 %v467, 7
        %v469 = vsub.s32 0, %v468
        %v470 = vrot.slane %v465, %v469
        %v473 = vsel %vm301, %v460, 0
        %475 = vmatprep.subr.mxu0 0.0
        %476 = vmatpush1.msra.mxu0 %v461
        %477 = vmatprep.subr.mxu0 0.0
        %478 = vmatpush1.msra.mxu0 %v462
        %479 = vmatprep.subr.mxu0 0.0
        %480 = vmatpush1.msra.mxu0 %v463
        %481 = vmatprep.subr.mxu0 0.0
        %482 = vmatpush1.msra.mxu0 %v464
        %483 = vmatprep.subr.mxu0 0.0
        %484 = vmatpush1.msra.mxu0 0.0
        %485 = vmatprep.subr.mxu0 0.0
        %486 = vmatpush1.msra.mxu0 0.0
        %487 = vmatprep.subr.mxu0 0.0
        %488 = vmatpush1.msra.mxu0 0.0
        %489 = vmatprep.subr.mxu0 0.0
        %490 = vmatpush1.msra.mxu0 0.0
        %491 = vmatprep.subr.mxu0 0.0
        %492 = vmatpush1.msra.mxu0 0.0
        %493 = vmatprep.subr.mxu0 0.0
        %494 = vmatpush1.msra.mxu0 0.0
        %495 = vmatprep.subr.mxu0 0.0
        %496 = vmatpush1.msra.mxu0 0.0
        %497 = vmatprep.subr.mxu0 0.0
        %498 = vmatpush1.msra.mxu0 0.0
        %499 = vmatprep.subr.mxu0 0.0
        %500 = vmatpush1.msra.mxu0 0.0
        %501 = vmatprep.subr.mxu0 0.0
        %502 = vmatpush1.msra.mxu0 0.0
        %503 = vmatprep.subr.mxu0 0.0
        %504 = vmatpush1.msra.mxu0 0.0
        %505 = vmatprep.subr.mxu0 0.0
        %506 = vmatpush1.msra.mxu0 0.0
        %507 = vmatprep.subr.mxu0 0.0
        %508 = vmatpush1.msra.mxu0 0.0
        %509 = vmatprep.subr.mxu0 0.0
        %510 = vmatpush1.msra.mxu0 0.0
        %511 = vmatprep.subr.mxu0 0.0
        %512 = vmatpush1.msra.mxu0 0.0
        %513 = vmatprep.subr.mxu0 0.0
        %514 = vmatpush1.msra.mxu0 0.0
        %515 = vmatprep.subr.mxu0 0.0
        %516 = vmatpush1.msra.mxu0 0.0
        %517 = vmatprep.subr.mxu0 0.0
        %518 = vmatpush1.msra.mxu0 0.0
        %519 = vmatprep.subr.mxu0 0.0
        %520 = vmatpush1.msra.mxu0 0.0
        %521 = vmatprep.subr.mxu0 0.0
        %522 = vmatpush1.msra.mxu0 0.0
        %523 = vmatprep.subr.mxu0 0.0
        %524 = vmatpush1.msra.mxu0 0.0
        %525 = vmatprep.subr.mxu0 0.0
        %526 = vmatpush1.msra.mxu0 0.0
        %527 = vmatprep.subr.mxu0 0.0
        %528 = vmatpush1.msra.mxu0 0.0
        %529 = vmatprep.subr.mxu0 0.0
        %530 = vmatpush1.msra.mxu0 0.0
        %531 = vmatprep.subr.mxu0 0.0
        %532 = vmatpush1.msra.mxu0 0.0
        %533 = vmatprep.subr.mxu0 0.0
        %534 = vmatpush1.msra.mxu0 0.0
        %535 = vmatprep.subr.mxu0 0.0
        %536 = vmatpush1.msra.mxu0 0.0
        %537 = vmatprep.subr.mxu0 0.0
        %538 = vmatpush1.msra.mxu0 0.0
        %539 = vmatprep.mubr.f32.mxu0 0.0
        %540 = vmatmul.mubr.f32.gmra.mrb[0].mxu0 %v473
        %v541 = vpop.f32.mrb[0].mxu0
        %v542 = vadd.f32 %v470, %v541
        %v543 = vpop.f32.mrb[0].mxu0
        %544 = vdwg.mxu0
        %vm545 = vcmask 130048
        %546 = vst.msk [vmem:[%s284] sm:$0xff] %vm545, %v542
        %s547 = sand.u32 %s182, 1
        %s548 = scalar_lea.sflag [#allocation4], %s547
        %s549 = sand.u32 %s182, 1
        %s550 = smul.addr %s549, 8
        %s551 = scalar_lea.vmem [#allocation5], %s550
        // Predicated region
        $region53: #{tpu_custom_call.1} parent=47 // pred_check
          %p552 = pneg %p192
        $region54: #{tpu_custom_call.1} parent=47 // pred_check_branch
          %554 = sbr.rel (%p552) target = $region56
        $region55: #{tpu_custom_call.1} parent=47 // pred_region
          %s556 = ssub.s32 128, 128
          %557 = vsyncadd %s548, %s556
          %s558 = smul.addr %s22, 128
          %s559 = scalar_lea.hbm %s7, %s558
          %s561 = sshll.u32 %s551, 4
          %s562 = int_to_ptr.vmem [resolvable:$true] %s561
          %564 = dma.vmem_to_hbm [thread:$0]  %s562, 128, %s559, %s548
        $region56: #{tpu_custom_call.1} parent=47 // pred_fallthru
          _
      $region48: #{tpu_custom_call.1} parent=5 // pred_fallthru
        _
      %p565 = scmp.le.s32.totalorder 2, %s17
      // Predicated region
      $region57: #{tpu_custom_call.1} parent=5 // pred_check
        %p566 = pneg %p565
      $region58: #{tpu_custom_call.1} parent=5 // pred_check_branch
        %568 = sbr.rel (%p566) target = $region60
      $region59: #{tpu_custom_call.1} parent=5 // pred_region
        %s569 = ssub.s32 %s17, 2
        // Predicated region
        $region61: #{tpu_custom_call.1} parent=59 // pred_check
          %p570 = pneg %p198
        $region62: #{tpu_custom_call.1} parent=59 // pred_check_branch
          %572 = sbr.rel (%p570) target = $region64
        $region63: #{tpu_custom_call.1} parent=59 // pred_region
          %s573 = sand.u32 %s183, 1
          %s574 = scalar_lea.sflag [#allocation4], %s573
          %s575 = sand.u32 %s183, 1
          %s576 = smul.addr %s575, 8
          %s577 = scalar_lea.vmem [#allocation5], %s576
          %578 = dma.done %s574, 128
        $region64: #{tpu_custom_call.1} parent=59 // pred_fallthru
          _
      $region60: #{tpu_custom_call.1} parent=5 // pred_fallthru
        _
    $region6: #{tpu_custom_call.1} parent=1 // loop_footer
      %s21 = sadd.s32 1, %s17
    $region7: #{tpu_custom_call.1} parent=1 // loop_footer_branch
      %16 = sbr.rel target = $region3
    $region8: #{tpu_custom_call.1} parent=1 // loop_exit
      _
    %579 = vsyncpa [#allocation3], 1
    %s580 = scalar_lea.sflag [#allocation3], 1
    %581 = vsyncpa %s580, 1
    %582 = vsyncpa [#allocation4], 1
    %s583 = scalar_lea.sflag [#allocation4], 1
    %584 = vsyncpa %s583, 1

// kernel: tpu_custom_call.1
$region0: #{tpu_custom_call.1}
  #allocation0 [shape = 'u32[]', space=smem, size = 0x4, offset = 0x4, fixed_abs, tag = 'smem constant byte address 0x4 - core index']
  #allocation1 [shape = 'u32[144,128]{1,0:T(1,128)}', space=vmem, size = 0x12000, scoped, tag = 'internal scratch']
  %s0 = inlined_call_operand.vmem [shape: f32[16,32], index: 0, kind: input, shape index: {}]
  %s1 = inlined_call_operand.vmem [shape: f32[32,32], index: 1, kind: input, shape index: {}]
  %s2 = inlined_call_operand.vmem [shape: f32[1,32], index: 2, kind: input, shape index: {}]
  %s3 = inlined_call_operand.hbm [shape: f32[32,32], index: 3, kind: input, shape index: {}]
  %s4 = inlined_call_operand.vmem [shape: f32[1,32], index: 4, kind: input, shape index: {}]
  %s5 = inlined_call_operand.vmem [shape: f32[32,16], index: 5, kind: input, shape index: {}]
  %s6 = inlined_call_operand.vmem [shape: f32[1,16], index: 6, kind: input, shape index: {}]
  %s7 = inlined_call_operand.hbm [shape: f32[16,16], index: 7, kind: output, shape index: {}]
  %s8 = sld [smem:[#allocation0]]
  $region65: #{tpu_custom_call.1} parent=0
    _
  %s10 = ssub.s32 1, %s8
  %s11 = scalar_select 0, %s10, %s8
  $region1: #{tpu_custom_call.1} parent=0
    #allocation2 [shape = 'u8[16384]{0}', space=vmem, size = 0x4000, scoped, tag = 'input window, operand 3, single buffered']
    #allocation3 [shape = 's32[2]{0}', space=sflag, size = 0x8, scoped, tag = 'scoped memory for tpu_custom_call.1']
    #allocation4 [shape = 's32[2]{0}', space=sflag, size = 0x8, scoped, tag = 'scoped memory for tpu_custom_call.1']
    #allocation5 [shape = 'u8[8192]{0}', space=vmem, size = 0x2000, scoped, tag = 'output window, operand 0']
    %12 = vsyncpa [#allocation3], 0
    %13 = vsyncpa [#allocation4], 0
    %s14 = scalar_lea.sflag [#allocation4], 1
    %15 = vsyncpa %s14, 0
    loop: start=0, step=1, limit=4
    $region2: #{tpu_custom_call.1} parent=1 // loop_pre_header
      _
    $region3: #{tpu_custom_call.1} parent=1 // loop_header
      %s17 = sphi 0, %s21
      %p18 = scmp.ge.s32.totalorder %s17, 4
      %s27 = sphi 0, %s29
      %s30 = sphi 0, %s27
      %s31 = sphi 0, %s30
      %s47 = sphi 0, %s31
      %s51 = sphi 0, %s51
      %s53 = sphi 0, %s51
      %s54 = sphi 0, %s53
      %s68 = sphi 0, %s54
      %s72 = sphi 0, %s72
      %s74 = sphi 0, %s72
      %s75 = sphi 0, %s74
      %s89 = sphi 0, %s75
      %s93 = sphi 0, %s93
      %s95 = sphi 0, %s93
      %s96 = sphi 0, %s95
      %s110 = sphi 0, %s96
      %s114 = sphi 0, %s114
      %s116 = sphi 0, %s114
      %s117 = sphi 0, %s116
      %s131 = sphi 0, %s117
      %s135 = sphi 0, %s135
      %s137 = sphi 0, %s135
      %s138 = sphi 0, %s137
      %s152 = sphi 0, %s138
      %s156 = sphi 0, %s156
      %s158 = sphi 0, %s156
      %s159 = sphi 0, %s158
      %s173 = sphi 0, %s159
      %s179 = sphi 0, %s181
      %s182 = sphi 0, %s179
      %s183 = sphi 0, %s182
      %s199 = sphi 0, %s183
    $region4: #{tpu_custom_call.1} parent=1 // loop_header_branch
      %20 = sbr.rel (%p18) target = $region8
    $region5: #{tpu_custom_call.1} parent=1 // loop_body
      %s22 = ssub.s32 %s17, 1
      %s23 = ssub.s32 %s17, 2
      %s24 = sadd.s32 %s17, 1
      %s25 = ssub.s32 %s17, %s24
      %p26 = scmp.eq.s32.totalorder %s25, 0
      %s28 = sadd.s32 %s27, 1
      %s29 = scalar_select %p26, %s27, %s28
      %p32 = pneg %p26
      %p33 = scmp.eq.s32.totalorder %s17, 1
      %p34 = por %p32, %p33
      %p35 = scmp.ne.s32.totalorder %s27, %s30
      %p36 = scmp.eq.s32.totalorder %s17, 0
      %p37 = por %p35, %p36
      %p38 = scmp.ne.s32.totalorder %s27, %s30
      %p39 = scmp.eq.s32.totalorder %s22, 1
      %p40 = por %p38, %p39
      %p41 = scmp.ne.s32.totalorder %s30, %s31
      %p42 = scmp.eq.s32.totalorder %s22, 0
      %p43 = por %p41, %p42
      %p44 = scmp.ne.s32.totalorder %s30, %s31
      %p45 = scmp.eq.s32.totalorder %s23, 1
      %p46 = por %p44, %p45
      %p48 = scmp.ne.s32.totalorder %s31, %s47
      %p49 = scmp.eq.s32.totalorder %s23, 0
      %p50 = por %p48, %p49
      %s52 = sadd.s32 %s51, 1
      %p55 = scmp.eq.s32.totalorder %s17, 1
      %p56 = scmp.ne.s32.totalorder %s51, %s53
      %p57 = scmp.eq.s32.totalorder %s17, 0
      %p58 = por %p56, %p57
      %p59 = scmp.ne.s32.totalorder %s51, %s53
      %p60 = scmp.eq.s32.totalorder %s22, 1
      %p61 = por %p59, %p60
      %p62 = scmp.ne.s32.totalorder %s53, %s54
      %p63 = scmp.eq.s32.totalorder %s22, 0
      %p64 = por %p62, %p63
      %p65 = scmp.ne.s32.totalorder %s53, %s54
      %p66 = scmp.eq.s32.totalorder %s23, 1
      %p67 = por %p65, %p66
      %p69 = scmp.ne.s32.totalorder %s54, %s68
      %p70 = scmp.eq.s32.totalorder %s23, 0
      %p71 = por %p69, %p70
      %s73 = sadd.s32 %s72, 1
      %p76 = scmp.eq.s32.totalorder %s17, 1
      %p77 = scmp.ne.s32.totalorder %s72, %s74
      %p78 = scmp.eq.s32.totalorder %s17, 0
      %p79 = por %p77, %p78
      %p80 = scmp.ne.s32.totalorder %s72, %s74
      %p81 = scmp.eq.s32.totalorder %s22, 1
      %p82 = por %p80, %p81
      %p83 = scmp.ne.s32.totalorder %s74, %s75
      %p84 = scmp.eq.s32.totalorder %s22, 0
      %p85 = por %p83, %p84
      %p86 = scmp.ne.s32.totalorder %s74, %s75
      %p87 = scmp.eq.s32.totalorder %s23, 1
      %p88 = por %p86, %p87
      %p90 = scmp.ne.s32.totalorder %s75, %s89
      %p91 = scmp.eq.s32.totalorder %s23, 0
      %p92 = por %p90, %p91
      %s94 = sadd.s32 %s93, 1
      %p97 = scmp.eq.s32.totalorder %s17, 1
      %p98 = scmp.ne.s32.totalorder %s93, %s95
      %p99 = scmp.eq.s32.totalorder %s17, 0
      %p100 = por %p98, %p99
      %p101 = scmp.ne.s32.totalorder %s93, %s95
      %p102 = scmp.eq.s32.totalorder %s22, 1
      %p103 = por %p101, %p102
      %p104 = scmp.ne.s32.totalorder %s95, %s96
      %p105 = scmp.eq.s32.totalorder %s22, 0
      %p106 = por %p104, %p105
      %p107 = scmp.ne.s32.totalorder %s95, %s96
      %p108 = scmp.eq.s32.totalorder %s23, 1
      %p109 = por %p107, %p108
      %p111 = scmp.ne.s32.totalorder %s96, %s110
      %p112 = scmp.eq.s32.totalorder %s23, 0
      %p113 = por %p111, %p112
      %s115 = sadd.s32 %s114, 1
      %p118 = scmp.eq.s32.totalorder %s17, 1
      %p119 = scmp.ne.s32.totalorder %s114, %s116
      %p120 = scmp.eq.s32.totalorder %s17, 0
      %p121 = por %p119, %p120
      %p122 = scmp.ne.s32.totalorder %s114, %s116
      %p123 = scmp.eq.s32.totalorder %s22, 1
      %p124 = por %p122, %p123
      %p125 = scmp.ne.s32.totalorder %s116, %s117
      %p126 = scmp.eq.s32.totalorder %s22, 0
      %p127 = por %p125, %p126
      %p128 = scmp.ne.s32.totalorder %s116, %s117
      %p129 = scmp.eq.s32.totalorder %s23, 1
      %p130 = por %p128, %p129
      %p132 = scmp.ne.s32.totalorder %s117, %s131
      %p133 = scmp.eq.s32.totalorder %s23, 0
      %p134 = por %p132, %p133
      %s136 = sadd.s32 %s135, 1
      %p139 = scmp.eq.s32.totalorder %s17, 1
      %p140 = scmp.ne.s32.totalorder %s135, %s137
      %p141 = scmp.eq.s32.totalorder %s17, 0
      %p142 = por %p140, %p141
      %p143 = scmp.ne.s32.totalorder %s135, %s137
      %p144 = scmp.eq.s32.totalorder %s22, 1
      %p145 = por %p143, %p144
      %p146 = scmp.ne.s32.totalorder %s137, %s138
      %p147 = scmp.eq.s32.totalorder %s22, 0
      %p148 = por %p146, %p147
      %p149 = scmp.ne.s32.totalorder %s137, %s138
      %p150 = scmp.eq.s32.totalorder %s23, 1
      %p151 = por %p149, %p150
      %p153 = scmp.ne.s32.totalorder %s138, %s152
      %p154 = scmp.eq.s32.totalorder %s23, 0
      %p155 = por %p153, %p154
      %s157 = sadd.s32 %s156, 1
      %p160 = scmp.eq.s32.totalorder %s17, 1
      %p161 = scmp.ne.s32.totalorder %s156, %s158
      %p162 = scmp.eq.s32.totalorder %s17, 0
      %p163 = por %p161, %p162
      %p164 = scmp.ne.s32.totalorder %s156, %s158
      %p165 = scmp.eq.s32.totalorder %s22, 1
      %p166 = por %p164, %p165
      %p167 = scmp.ne.s32.totalorder %s158, %s159
      %p168 = scmp.eq.s32.totalorder %s22, 0
      %p169 = por %p167, %p168
      %p170 = scmp.ne.s32.totalorder %s158, %s159
      %p171 = scmp.eq.s32.totalorder %s23, 1
      %p172 = por %p170, %p171
      %p174 = scmp.ne.s32.totalorder %s159, %s173
      %p175 = scmp.eq.s32.totalorder %s23, 0
      %p176 = por %p174, %p175
      %s177 = ssub.s32 %s17, %s24
      %p178 = scmp.eq.s32.totalorder %s177, 0
      %s180 = sadd.s32 %s179, 1
      %s181 = scalar_select %p178, %s179, %s180
      %p184 = pneg %p178
      %p185 = scmp.eq.s32.totalorder %s17, 1
      %p186 = por %p184, %p185
      %p187 = scmp.ne.s32.totalorder %s179, %s182
      %p188 = scmp.eq.s32.totalorder %s17, 0
      %p189 = por %p187, %p188
      %p190 = scmp.ne.s32.totalorder %s179, %s182
      %p191 = scmp.eq.s32.totalorder %s22, 1
      %p192 = por %p190, %p191
      %p193 = scmp.ne.s32.totalorder %s182, %s183
      %p194 = scmp.eq.s32.totalorder %s22, 0
      %p195 = por %p193, %p194
      %p196 = scmp.ne.s32.totalorder %s182, %s183
      %p197 = scmp.eq.s32.totalorder %s23, 1
      %p198 = por %p196, %p197
      %p200 = scmp.ne.s32.totalorder %s183, %s199
      %p201 = scmp.eq.s32.totalorder %s23, 0
      %p202 = por %p200, %p201
      %p203 = scmp.le.s32.totalorder 1, %s17
      %p204 = scmp.lt.s32.totalorder %s17, 3
      %p205 = pnand %p203, %p204
      %p206 = pneg %p205
      // Predicated region
      $region9: #{tpu_custom_call.1} parent=5 // pred_check
        _
      $region10: #{tpu_custom_call.1} parent=5 // pred_check_branch
        %208 = sbr.rel (%p205) target = $region12
      $region11: #{tpu_custom_call.1} parent=5 // pred_region
        %s209 = ssub.s32 %s17, 1
        // Predicated region
        $region13: #{tpu_custom_call.1} parent=11 // pred_check
          %p210 = pneg %p64
        $region14: #{tpu_custom_call.1} parent=11 // pred_check_branch
          %212 = sbr.rel (%p210) target = $region16
        $region15: #{tpu_custom_call.1} parent=11 // pred_region
          _
        $region16: #{tpu_custom_call.1} parent=11 // pred_fallthru
          _
        // Predicated region
        $region17: #{tpu_custom_call.1} parent=11 // pred_check
          %p213 = pneg %p85
        $region18: #{tpu_custom_call.1} parent=11 // pred_check_branch
          %215 = sbr.rel (%p213) target = $region20
        $region19: #{tpu_custom_call.1} parent=11 // pred_region
          _
        $region20: #{tpu_custom_call.1} parent=11 // pred_fallthru
          _
        // Predicated region
        $region21: #{tpu_custom_call.1} parent=11 // pred_check
          %p216 = pneg %p106
        $region22: #{tpu_custom_call.1} parent=11 // pred_check_branch
          %218 = sbr.rel (%p216) target = $region24
        $region23: #{tpu_custom_call.1} parent=11 // pred_region
          %s220 = ssub.s32 512, 512
          %221 = vsyncadd [#allocation3], %s220
          %s222 = sshll.u32 [#allocation2], 4
          %s223 = int_to_ptr.vmem [resolvable:$true] %s222
          %228 = dma.hbm_to_vmem [thread:$0]  %s3, 512, %s223, [#allocation3], 128, 128, 8
        $region24: #{tpu_custom_call.1} parent=11 // pred_fallthru
          _
        // Predicated region
        $region25: #{tpu_custom_call.1} parent=11 // pred_check
          %p229 = pneg %p127
        $region26: #{tpu_custom_call.1} parent=11 // pred_check_branch
          %231 = sbr.rel (%p229) target = $region28
        $region27: #{tpu_custom_call.1} parent=11 // pred_region
          _
        $region28: #{tpu_custom_call.1} parent=11 // pred_fallthru
          _
        // Predicated region
        $region29: #{tpu_custom_call.1} parent=11 // pred_check
          %p232 = pneg %p148
        $region30: #{tpu_custom_call.1} parent=11 // pred_check_branch
          %234 = sbr.rel (%p232) target = $region32
        $region31: #{tpu_custom_call.1} parent=11 // pred_region
          _
        $region32: #{tpu_custom_call.1} parent=11 // pred_fallthru
          _
        // Predicated region
        $region33: #{tpu_custom_call.1} parent=11 // pred_check
          %p235 = pneg %p169
        $region34: #{tpu_custom_call.1} parent=11 // pred_check_branch
          %237 = sbr.rel (%p235) target = $region36
        $region35: #{tpu_custom_call.1} parent=11 // pred_region
          _
        $region36: #{tpu_custom_call.1} parent=11 // pred_fallthru
          _
      $region12: #{tpu_custom_call.1} parent=5 // pred_fallthru
        _
      %p238 = scmp.lt.s32.totalorder %s17, 2
      // Predicated region
      $region37: #{tpu_custom_call.1} parent=5 // pred_check
        %p239 = pneg %p238
      $region38: #{tpu_custom_call.1} parent=5 // pred_check_branch
        %241 = sbr.rel (%p239) target = $region40
      $region39: #{tpu_custom_call.1} parent=5 // pred_region
        // Predicated region
        $region41: #{tpu_custom_call.1} parent=39 // pred_check
          %p242 = pneg %p37
        $region42: #{tpu_custom_call.1} parent=39 // pred_check_branch
          %244 = sbr.rel (%p242) target = $region44
        $region43: #{tpu_custom_call.1} parent=39 // pred_region
          %p245 = scmp.lt.s32.totalorder %s17, 1
          %s246 = scalar_select %p245, %s17, 1
          %s247 = smul.addr %s246, 8
          %s248 = scalar_lea.vmem %s0, %s247
        $region44: #{tpu_custom_call.1} parent=39 // pred_fallthru
          _
      $region40: #{tpu_custom_call.1} parent=5 // pred_fallthru
        _
      %p249 = scmp.le.s32.totalorder 1, %s17
      %p250 = scmp.lt.s32.totalorder %s17, 3
      %p251 = pnand %p249, %p250
      %p252 = pneg %p251
      // Predicated region
      $region45: #{tpu_custom_call.1} parent=5 // pred_check
        _
      $region46: #{tpu_custom_call.1} parent=5 // pred_check_branch
        %254 = sbr.rel (%p251) target = $region48
      $region47: #{tpu_custom_call.1} parent=5 // pred_region
        %s255 = ssub.s32 %s17, 1
        // Predicated region
        $region49: #{tpu_custom_call.1} parent=47 // pred_check
          %p256 = pneg %p106
        $region50: #{tpu_custom_call.1} parent=47 // pred_check_branch
          %258 = sbr.rel (%p256) target = $region52
        $region51: #{tpu_custom_call.1} parent=47 // pred_region
          %259 = dma.done [#allocation3], 512
        $region52: #{tpu_custom_call.1} parent=47 // pred_fallthru
          _
        %p260 = scmp.lt.s32.totalorder %s22, 1
        %s261 = scalar_select %p260, %s22, 1
        %s262 = smul.addr %s261, 8
        %s263 = scalar_lea.vmem %s0, %s262
        %p264 = pneg %p43
        %p265 = pneg %p40
        %p266 = pneg %p64
        %p267 = pneg %p61
        %p268 = pneg %p85
        %p269 = pneg %p82
        %p270 = pneg %p106
        %p271 = pneg %p103
        %p272 = pneg %p127
        %p273 = pneg %p124
        %p274 = pneg %p148
        %p275 = pneg %p145
        %p276 = pneg %p169
        %p277 = pneg %p166
        %p278 = pneg %p195
        %p279 = pneg %p192
        %s280 = sand.u32 %s182, 1
        %s281 = scalar_lea.sflag [#allocation4], %s280
        %s282 = sand.u32 %s182, 1
        %s283 = smul.addr %s282, 8
        %s284 = scalar_lea.vmem [#allocation5], %s283
        %p285 = scmp.lt.s32.totalorder %s22, 1
        %s286 = scalar_select %p285, %s22, 1
        %s287 = smul.addr %s286, 8
        %s288 = scalar_lea.vmem %s0, %s287
        %v289 = vld [vmem:[%s288] sm:$0xff]
        %v290 = vld [vmem:[%s1] sm:$0xff]
        %v291 = vld [vmem:[%s1 + $0x8] sm:$0xff]
        %v292 = vld [vmem:[%s1 + $0x10] sm:$0xff]
        %v293 = vld [vmem:[%s1 + $0x18] sm:$0xff]
        %v294 = vld [vmem:[%s2] sm:$0x1]
        %v296 = vlaneseq
        %v297 = vshrl.u32 %v296, 7
        %v298 = vsub.s32 0, %v297
        %v299 = vrot.slane %v294, %v298
        %vm301 = vcmask 261120
        %v303 = vsel %vm301, %v289, 0
        %305 = vmatprep.subr.mxu0 0.0
        %306 = vmatpush1.msra.mxu0 %v290
        %307 = vmatprep.subr.mxu0 0.0
        %308 = vmatpush1.msra.mxu0 %v291
        %309 = vmatprep.subr.mxu0 0.0
        %310 = vmatpush1.msra.mxu0 %v292
        %311 = vmatprep.subr.mxu0 0.0
        %312 = vmatpush1.msra.mxu0 %v293
        %313 = vmatprep.subr.mxu0 0.0
        %314 = vmatpush1.msra.mxu0 0.0
        %315 = vmatprep.subr.mxu0 0.0
        %316 = vmatpush1.msra.mxu0 0.0
        %317 = vmatprep.subr.mxu0 0.0
        %318 = vmatpush1.msra.mxu0 0.0
        %319 = vmatprep.subr.mxu0 0.0
        %320 = vmatpush1.msra.mxu0 0.0
        %321 = vmatprep.subr.mxu0 0.0
        %322 = vmatpush1.msra.mxu0 0.0
        %323 = vmatprep.subr.mxu0 0.0
        %324 = vmatpush1.msra.mxu0 0.0
        %325 = vmatprep.subr.mxu0 0.0
        %326 = vmatpush1.msra.mxu0 0.0
        %327 = vmatprep.subr.mxu0 0.0
        %328 = vmatpush1.msra.mxu0 0.0
        %329 = vmatprep.subr.mxu0 0.0
        %330 = vmatpush1.msra.mxu0 0.0
        %331 = vmatprep.subr.mxu0 0.0
        %332 = vmatpush1.msra.mxu0 0.0
        %333 = vmatprep.subr.mxu0 0.0
        %334 = vmatpush1.msra.mxu0 0.0
        %335 = vmatprep.subr.mxu0 0.0
        %336 = vmatpush1.msra.mxu0 0.0
        %337 = vmatprep.subr.mxu0 0.0
        %338 = vmatpush1.msra.mxu0 0.0
        %339 = vmatprep.subr.mxu0 0.0
        %340 = vmatpush1.msra.mxu0 0.0
        %341 = vmatprep.subr.mxu0 0.0
        %342 = vmatpush1.msra.mxu0 0.0
        %343 = vmatprep.subr.mxu0 0.0
        %344 = vmatpush1.msra.mxu0 0.0
        %345 = vmatprep.subr.mxu0 0.0
        %346 = vmatpush1.msra.mxu0 0.0
        %347 = vmatprep.subr.mxu0 0.0
        %348 = vmatpush1.msra.mxu0 0.0
        %349 = vmatprep.subr.mxu0 0.0
        %350 = vmatpush1.msra.mxu0 0.0
        %351 = vmatprep.subr.mxu0 0.0
        %352 = vmatpush1.msra.mxu0 0.0
        %353 = vmatprep.subr.mxu0 0.0
        %354 = vmatpush1.msra.mxu0 0.0
        %355 = vmatprep.subr.mxu0 0.0
        %356 = vmatpush1.msra.mxu0 0.0
        %357 = vmatprep.subr.mxu0 0.0
        %358 = vmatpush1.msra.mxu0 0.0
        %359 = vmatprep.subr.mxu0 0.0
        %360 = vmatpush1.msra.mxu0 0.0
        %361 = vmatprep.subr.mxu0 0.0
        %362 = vmatpush1.msra.mxu0 0.0
        %363 = vmatprep.subr.mxu0 0.0
        %364 = vmatpush1.msra.mxu0 0.0
        %365 = vmatprep.subr.mxu0 0.0
        %366 = vmatpush1.msra.mxu0 0.0
        %367 = vmatprep.subr.mxu0 0.0
        %368 = vmatpush1.msra.mxu0 0.0
        %369 = vmatprep.mubr.f32.mxu0 0.0
        %370 = vmatmul.mubr.f32.gmra.mrb[0].mxu0 %v303
        %v371 = vpop.f32.mrb[0].mxu0
        %v372 = vadd.f32 %v299, %v371
        %v373 = vpop.f32.mrb[0].mxu0
        %374 = vdwg.mxu0
        %v375 = vmax.f32 %v372, 0.0
        %v376 = vld [vmem:[#allocation2] sm:$0xff]
        %v377 = vld [vmem:[#allocation2 + $0x8] sm:$0xff]
        %v378 = vld [vmem:[#allocation2 + $0x10] sm:$0xff]
        %v379 = vld [vmem:[#allocation2 + $0x18] sm:$0xff]
        %v380 = vld [vmem:[%s4] sm:$0x1]
        %v382 = vlaneseq
        %v383 = vshrl.u32 %v382, 7
        %v384 = vsub.s32 0, %v383
        %v385 = vrot.slane %v380, %v384
        %v388 = vsel %vm301, %v375, 0
        %390 = vmatprep.subr.mxu0 0.0
        %391 = vmatpush1.msra.mxu0 %v376
        %392 = vmatprep.subr.mxu0 0.0
        %393 = vmatpush1.msra.mxu0 %v377
        %394 = vmatprep.subr.mxu0 0.0
        %395 = vmatpush1.msra.mxu0 %v378
        %396 = vmatprep.subr.mxu0 0.0
        %397 = vmatpush1.msra.mxu0 %v379
        %398 = vmatprep.subr.mxu0 0.0
        %399 = vmatpush1.msra.mxu0 0.0
        %400 = vmatprep.subr.mxu0 0.0
        %401 = vmatpush1.msra.mxu0 0.0
        %402 = vmatprep.subr.mxu0 0.0
        %403 = vmatpush1.msra.mxu0 0.0
        %404 = vmatprep.subr.mxu0 0.0
        %405 = vmatpush1.msra.mxu0 0.0
        %406 = vmatprep.subr.mxu0 0.0
        %407 = vmatpush1.msra.mxu0 0.0
        %408 = vmatprep.subr.mxu0 0.0
        %409 = vmatpush1.msra.mxu0 0.0
        %410 = vmatprep.subr.mxu0 0.0
        %411 = vmatpush1.msra.mxu0 0.0
        %412 = vmatprep.subr.mxu0 0.0
        %413 = vmatpush1.msra.mxu0 0.0
        %414 = vmatprep.subr.mxu0 0.0
        %415 = vmatpush1.msra.mxu0 0.0
        %416 = vmatprep.subr.mxu0 0.0
        %417 = vmatpush1.msra.mxu0 0.0
        %418 = vmatprep.subr.mxu0 0.0
        %419 = vmatpush1.msra.mxu0 0.0
        %420 = vmatprep.subr.mxu0 0.0
        %421 = vmatpush1.msra.mxu0 0.0
        %422 = vmatprep.subr.mxu0 0.0
        %423 = vmatpush1.msra.mxu0 0.0
        %424 = vmatprep.subr.mxu0 0.0
        %425 = vmatpush1.msra.mxu0 0.0
        %426 = vmatprep.subr.mxu0 0.0
        %427 = vmatpush1.msra.mxu0 0.0
        %428 = vmatprep.subr.mxu0 0.0
        %429 = vmatpush1.msra.mxu0 0.0
        %430 = vmatprep.subr.mxu0 0.0
        %431 = vmatpush1.msra.mxu0 0.0
        %432 = vmatprep.subr.mxu0 0.0
        %433 = vmatpush1.msra.mxu0 0.0
        %434 = vmatprep.subr.mxu0 0.0
        %435 = vmatpush1.msra.mxu0 0.0
        %436 = vmatprep.subr.mxu0 0.0
        %437 = vmatpush1.msra.mxu0 0.0
        %438 = vmatprep.subr.mxu0 0.0
        %439 = vmatpush1.msra.mxu0 0.0
        %440 = vmatprep.subr.mxu0 0.0
        %441 = vmatpush1.msra.mxu0 0.0
        %442 = vmatprep.subr.mxu0 0.0
        %443 = vmatpush1.msra.mxu0 0.0
        %444 = vmatprep.subr.mxu0 0.0
        %445 = vmatpush1.msra.mxu0 0.0
        %446 = vmatprep.subr.mxu0 0.0
        %447 = vmatpush1.msra.mxu0 0.0
        %448 = vmatprep.subr.mxu0 0.0
        %449 = vmatpush1.msra.mxu0 0.0
        %450 = vmatprep.subr.mxu0 0.0
        %451 = vmatpush1.msra.mxu0 0.0
        %452 = vmatprep.subr.mxu0 0.0
        %453 = vmatpush1.msra.mxu0 0.0
        %454 = vmatprep.mubr.f32.mxu0 0.0
        %455 = vmatmul.mubr.f32.gmra.mrb[0].mxu0 %v388
        %v456 = vpop.f32.mrb[0].mxu0
        %v457 = vadd.f32 %v385, %v456
        %v458 = vpop.f32.mrb[0].mxu0
        %459 = vdwg.mxu0
        %v460 = vmax.f32 %v457, 0.0
        %v461 = vld [vmem:[%s5] sm:$0xff]
        %v462 = vld [vmem:[%s5 + $0x8] sm:$0xff]
        %v463 = vld [vmem:[%s5 + $0x10] sm:$0xff]
        %v464 = vld [vmem:[%s5 + $0x18] sm:$0xff]
        %v465 = vld [vmem:[%s6] sm:$0x1]
        %v467 = vlaneseq
        %v468 = vshrl.u32 %v467, 7
        %v469 = vsub.s32 0, %v468
        %v470 = vrot.slane %v465, %v469
        %v473 = vsel %vm301, %v460, 0
        %475 = vmatprep.subr.mxu0 0.0
        %476 = vmatpush1.msra.mxu0 %v461
        %477 = vmatprep.subr.mxu0 0.0
        %478 = vmatpush1.msra.mxu0 %v462
        %479 = vmatprep.subr.mxu0 0.0
        %480 = vmatpush1.msra.mxu0 %v463
        %481 = vmatprep.subr.mxu0 0.0
        %482 = vmatpush1.msra.mxu0 %v464
        %483 = vmatprep.subr.mxu0 0.0
        %484 = vmatpush1.msra.mxu0 0.0
        %485 = vmatprep.subr.mxu0 0.0
        %486 = vmatpush1.msra.mxu0 0.0
        %487 = vmatprep.subr.mxu0 0.0
        %488 = vmatpush1.msra.mxu0 0.0
        %489 = vmatprep.subr.mxu0 0.0
        %490 = vmatpush1.msra.mxu0 0.0
        %491 = vmatprep.subr.mxu0 0.0
        %492 = vmatpush1.msra.mxu0 0.0
        %493 = vmatprep.subr.mxu0 0.0
        %494 = vmatpush1.msra.mxu0 0.0
        %495 = vmatprep.subr.mxu0 0.0
        %496 = vmatpush1.msra.mxu0 0.0
        %497 = vmatprep.subr.mxu0 0.0
        %498 = vmatpush1.msra.mxu0 0.0
        %499 = vmatprep.subr.mxu0 0.0
        %500 = vmatpush1.msra.mxu0 0.0
        %501 = vmatprep.subr.mxu0 0.0
        %502 = vmatpush1.msra.mxu0 0.0
        %503 = vmatprep.subr.mxu0 0.0
        %504 = vmatpush1.msra.mxu0 0.0
        %505 = vmatprep.subr.mxu0 0.0
        %506 = vmatpush1.msra.mxu0 0.0
        %507 = vmatprep.subr.mxu0 0.0
        %508 = vmatpush1.msra.mxu0 0.0
        %509 = vmatprep.subr.mxu0 0.0
        %510 = vmatpush1.msra.mxu0 0.0
        %511 = vmatprep.subr.mxu0 0.0
        %512 = vmatpush1.msra.mxu0 0.0
        %513 = vmatprep.subr.mxu0 0.0
        %514 = vmatpush1.msra.mxu0 0.0
        %515 = vmatprep.subr.mxu0 0.0
        %516 = vmatpush1.msra.mxu0 0.0
        %517 = vmatprep.subr.mxu0 0.0
        %518 = vmatpush1.msra.mxu0 0.0
        %519 = vmatprep.subr.mxu0 0.0
        %520 = vmatpush1.msra.mxu0 0.0
        %521 = vmatprep.subr.mxu0 0.0
        %522 = vmatpush1.msra.mxu0 0.0
        %523 = vmatprep.subr.mxu0 0.0
        %524 = vmatpush1.msra.mxu0 0.0
        %525 = vmatprep.subr.mxu0 0.0
        %526 = vmatpush1.msra.mxu0 0.0
        %527 = vmatprep.subr.mxu0 0.0
        %528 = vmatpush1.msra.mxu0 0.0
        %529 = vmatprep.subr.mxu0 0.0
        %530 = vmatpush1.msra.mxu0 0.0
        %531 = vmatprep.subr.mxu0 0.0
        %532 = vmatpush1.msra.mxu0 0.0
        %533 = vmatprep.subr.mxu0 0.0
        %534 = vmatpush1.msra.mxu0 0.0
        %535 = vmatprep.subr.mxu0 0.0
        %536 = vmatpush1.msra.mxu0 0.0
        %537 = vmatprep.subr.mxu0 0.0
        %538 = vmatpush1.msra.mxu0 0.0
        %539 = vmatprep.mubr.f32.mxu0 0.0
        %540 = vmatmul.mubr.f32.gmra.mrb[0].mxu0 %v473
        %v541 = vpop.f32.mrb[0].mxu0
        %v542 = vadd.f32 %v470, %v541
        %v543 = vpop.f32.mrb[0].mxu0
        %544 = vdwg.mxu0
        %vm545 = vcmask 130048
        %546 = vst.msk [vmem:[%s284] sm:$0xff] %vm545, %v542
        %s547 = sand.u32 %s182, 1
        %s548 = scalar_lea.sflag [#allocation4], %s547
        %s549 = sand.u32 %s182, 1
        %s550 = smul.addr %s549, 8
        %s551 = scalar_lea.vmem [#allocation5], %s550
        // Predicated region
        $region53: #{tpu_custom_call.1} parent=47 // pred_check
          %p552 = pneg %p192
        $region54: #{tpu_custom_call.1} parent=47 // pred_check_branch
          %554 = sbr.rel (%p552) target = $region56
        $region55: #{tpu_custom_call.1} parent=47 // pred_region
          %s556 = ssub.s32 128, 128
          %557 = vsyncadd %s548, %s556
          %s558 = smul.addr %s22, 128
          %s559 = scalar_lea.hbm %s7, %s558
          %s561 = sshll.u32 %s551, 4
          %s562 = int_to_ptr.vmem [resolvable:$true] %s561
          %564 = dma.vmem_to_hbm [thread:$0]  %s562, 128, %s559, %s548
        $region56: #{tpu_custom_call.1} parent=47 // pred_fallthru
          _
      $region48: #{tpu_custom_call.1} parent=5 // pred_fallthru
        _
      %p565 = scmp.le.s32.totalorder 2, %s17
      // Predicated region
      $region57: #{tpu_custom_call.1} parent=5 // pred_check
        %p566 = pneg %p565
      $region58: #{tpu_custom_call.1} parent=5 // pred_check_branch
        %568 = sbr.rel (%p566) target = $region60
      $region59: #{tpu_custom_call.1} parent=5 // pred_region
        %s569 = ssub.s32 %s17, 2
        // Predicated region
        $region61: #{tpu_custom_call.1} parent=59 // pred_check
          %p570 = pneg %p198
        $region62: #{tpu_custom_call.1} parent=59 // pred_check_branch
          %572 = sbr.rel (%p570) target = $region64
        $region63: #{tpu_custom_call.1} parent=59 // pred_region
          %s573 = sand.u32 %s183, 1
          %s574 = scalar_lea.sflag [#allocation4], %s573
          %s575 = sand.u32 %s183, 1
          %s576 = smul.addr %s575, 8
          %s577 = scalar_lea.vmem [#allocation5], %s576
          %578 = dma.done %s574, 128
        $region64: #{tpu_custom_call.1} parent=59 // pred_fallthru
          _
      $region60: #{tpu_custom_call.1} parent=5 // pred_fallthru
        _
    $region6: #{tpu_custom_call.1} parent=1 // loop_footer
      %s21 = sadd.s32 1, %s17
    $region7: #{tpu_custom_call.1} parent=1 // loop_footer_branch
      %16 = sbr.rel target = $region3
    $region8: #{tpu_custom_call.1} parent=1 // loop_exit
      _
    %579 = vsyncpa [#allocation3], 1
    %s580 = scalar_lea.sflag [#allocation3], 1
    %581 = vsyncpa %s580, 1
    %582 = vsyncpa [#allocation4], 1
    %s583 = scalar_lea.sflag [#allocation4], 1
    %584 = vsyncpa %s583, 1

</llo_original>
